<compile_context>
chip_gen: v7x
topology: tpu7x:2x2x1
jax: 0.10.0
libtpu: 0.0.40
codegen_flags: <defaults>
</compile_context>

<pallas_src>
import jax
import jax.numpy as jnp
from jax.experimental import pallas as pl
from jax.experimental.pallas import tpu as pltpu
from typing import NamedTuple


def _round_up(x: int, m: int) -> int:
    return ((x + m - 1) // m) * m


class FusedParams(NamedTuple):
    rhs: jax.Array    # [n_cat*Kp + Np, C*D] bf16 block-diagonal weights
    bias: jax.Array   # [1, C*D] f32 (zeros over the categorical slab)
    n_cat: int
    n_num: int
    K: int
    Kp: int
    Np: int
    D: int


def build_fused_params(emb_tables, num_w, num_b):
    """One-time parameter preprocessing (call at setup, not per forward).

    emb_tables: [n_cat, K, D] f32, num_w/num_b: [n_num, D] f32.
    Builds the block-diagonal fused RHS and the flattened bias row."""
    n_cat, K, D = emb_tables.shape
    n_num = num_w.shape[0]
    assert n_cat >= 1 and n_num >= 1  # TODO(synk): general ColType dicts
    C = n_cat + n_num

    # Pad the category axis of every table to a multiple of 128 with ZERO
    # rows (lane-dense one-hot operand; padded / OOB indices contribute 0).
    Kp = max(128, _round_up(K, 128))
    # Lane width of the numerical block of the LHS (features padded to 128
    # so every concat piece in the kernel is a whole number of vreg tiles).
    Np = max(128, _round_up(n_num, 128))
    KK = n_cat * Kp + Np

    rhs = jnp.zeros((KK, C * D), jnp.float32)
    for c in range(n_cat):
        rhs = rhs.at[c * Kp:c * Kp + K, c * D:(c + 1) * D].set(emb_tables[c])
    for c in range(n_num):
        row = n_cat * Kp + c
        col = (n_cat + c) * D
        rhs = rhs.at[row, col:col + D].set(num_w[c])

    bias = jnp.concatenate(
        [jnp.zeros((n_cat * D,), jnp.float32), num_b.reshape(-1)]
    ).reshape(1, C * D)

    return FusedParams(rhs=rhs.astype(jnp.bfloat16), bias=bias,
                       n_cat=n_cat, n_num=n_num, K=K, Kp=Kp, Np=Np, D=D)


def _table_type_transform_kernel(feat_cat_ref, feat_num_ref, rhs_ref,
                                 bias_ref, out_ref):
    TB, n_cat = feat_cat_ref.shape
    Np = feat_num_ref.shape[1]
    KK = rhs_ref.shape[0]
    Kp = (KK - Np) // n_cat

    feat_cat = feat_cat_ref[...]                              # [TB, n_cat] i32

    # Hoisted lane-dense iota over the (padded) category axis: [TB, Kp].
    iota_k = jax.lax.broadcasted_iota(jnp.int32, (TB, Kp), 1)

    # Fused LHS [TB, KK] in bf16: per-column one-hots (exact in bf16) followed
    # by the (pre-padded) numerical features.  Every piece is a multiple of
    # 128 lanes so the concat is pure vreg placement, no lane relayout.
    # Static Python loop is fine for a handful of columns.
    # TODO(synk): switch to lax.fori_loop/grid axis if n_cat grows to dozens.
    parts = []
    for c in range(n_cat):
        parts.append((iota_k == feat_cat[:, c:c + 1]).astype(jnp.bfloat16))
    parts.append(feat_num_ref[...].astype(jnp.bfloat16))
    lhs = jnp.concatenate(parts, axis=1)                      # [TB, KK]

    # One MXU matmul against the block-diagonal RHS yields the whole output
    # slab [TB, C*D]; one f32 bias add; one contiguous lane-dense store.
    acc = jnp.dot(lhs, rhs_ref[...], preferred_element_type=jnp.float32)
    out_ref[...] = (acc + bias_ref[...]).astype(out_ref.dtype)


def table_type_transform(feat_cat, feat_num, params: FusedParams,
                         *, batch_tile=512, out_dtype=jnp.float32):
    """feat_cat: [B, n_cat] int, feat_num: [B, n_num] float,
    params: FusedParams from build_fused_params
    -> [B, n_cat + n_num, D] (concat along the column axis)."""
    B, n_cat = feat_cat.shape
    n_num = feat_num.shape[1]
    assert n_cat == params.n_cat and n_num == params.n_num
    C = n_cat + n_num
    D = params.D
    Np = params.Np
    KK = params.rhs.shape[0]

    # Batch tile: multiple of 8 sublanes, capped at batch_tile.  Prefer at
    # least 2 grid steps so ("parallel",) can use both TensorCores on v7x.
    TB = min(int(batch_tile), _round_up(B, 8))
    if B > 8 and TB * 2 > _round_up(B, 8):
        TB = _round_up(pl.cdiv(B, 2), 8)
    TB = max(8, _round_up(TB, 8))
    B_pad = _round_up(B, TB)

    if B_pad != B:
        feat_cat = jnp.pad(feat_cat, ((0, B_pad - B), (0, 0)))
        feat_num = jnp.pad(feat_num, ((0, B_pad - B), (0, 0)))
    # Pad numerical features to lane width Np (zero columns hit zero RHS rows).
    if Np != n_num:
        feat_num = jnp.pad(feat_num, ((0, 0), (0, Np - n_num)))

    feat_cat = feat_cat.astype(jnp.int32)
    feat_num = feat_num.astype(jnp.float32)

    grid = (B_pad // TB,)

    out2d = pl.pallas_call(
        _table_type_transform_kernel,
        out_shape=jax.ShapeDtypeStruct((B_pad, C * D), out_dtype),
        grid=grid,
        in_specs=[
            pl.BlockSpec((TB, n_cat), lambda i: (i, 0)),    # categorical feats
            pl.BlockSpec((TB, Np), lambda i: (i, 0)),       # numerical feats
            # Grid-invariant fused weights / bias (constant index_map).
            # TODO(synk): single-buffer these (pipeline_mode) / column-tile
            # them for v7x's 64 MiB VMEM when the tables get large.
            pl.BlockSpec((KK, C * D), lambda i: (0, 0)),    # block-diag RHS
            pl.BlockSpec((1, C * D), lambda i: (0, 0)),     # bias row
        ],
        # Lane-dense output slab: one contiguous DMA writeback per batch tile.
        out_specs=pl.BlockSpec((TB, C * D), lambda i: (i, 0)),
        compiler_params=pltpu.CompilerParams(
            dimension_semantics=("parallel",),   # shard batch grid across TCs
            vmem_limit_bytes=32 << 20,           # headroom on v7x's 64 MiB VMEM
        ),
    )(feat_cat, feat_num, params.rhs, params.bias)

    # Free metadata reshape of the contiguous HBM slab back to [B, C, D]
    # (the same layout torch.cat(xs, dim=1) produces).
    return out2d[:B].reshape(B, C, D)


def reference(feat_cat, feat_num, emb_tables, num_w, num_b):
    # Pure-JAX reference of the same forward semantics.
    cat_out = jnp.take_along_axis(
        emb_tables[None, :, :, :],                        # [1, n_cat, K, D]
        feat_cat[:, :, None, None].astype(jnp.int32),     # [B, n_cat, 1, 1]
        axis=2,
    )[:, :, 0, :]                                         # [B, n_cat, D]
    num_out = feat_num[:, :, None] * num_w[None] + num_b[None]
    return jnp.concatenate([cat_out, num_out], axis=1)


if __name__ == "__main__":
    # Small shapes consistent with the module's forward.
    B = 48           # batch (TB=24 -> grid of 2, exercises the parallel axis)
    D = 32           # out_dim
    n_cat = 3        # categorical columns
    n_num = 4        # numerical columns
    cardinalities = [5, 7, 4]
    K = 8            # max categories per column (padded to 128 in setup)

    key = jax.random.PRNGKey(0)
    k_tab, k_w, k_b, k_cat, k_num = jax.random.split(key, 5)

    # Deterministic synthetic parameters (no checkpoint loading).
    emb_tables = jax.random.normal(k_tab, (n_cat, K, D), dtype=jnp.float32) * 0.1
    num_w = jax.random.normal(k_w, (n_num, D), dtype=jnp.float32) * 0.1
    num_b = jax.random.normal(k_b, (n_num, D), dtype=jnp.float32) * 0.01

    # One-time parameter preprocessing (block-diag RHS + bias row).
    fused = build_fused_params(emb_tables, num_w, num_b)

    # Inputs: categorical indices within each column's cardinality, floats.
    cat_cols = []
    for j, card in enumerate(cardinalities):
        kj = jax.random.fold_in(k_cat, j)
        cat_cols.append(jax.random.randint(kj, (B, 1), 0, card, dtype=jnp.int32))
    feat_cat = jnp.concatenate(cat_cols, axis=1)          # [B, n_cat]
    feat_num = jax.random.normal(k_num, (B, n_num), dtype=jnp.float32)

    out = table_type_transform(feat_cat, feat_num, fused)
    out = jax.block_until_ready(out)

    ref = reference(feat_cat, feat_num, emb_tables, num_w, num_b)
    assert out.shape == (B, n_cat + n_num, D), out.shape
    # bf16 MXU operands: one-hots are exact 0/1, tables are O(0.1) (<=4e-4 abs
    # error on the categorical slab); the numerical slab sees bf16 rounding of
    # x and w (~2^-8 relative of x*w, O(1) activations) -> 5e-3 bounds it.
    assert jnp.allclose(out, ref, atol=5e-3, rtol=5e-3), "mismatch vs reference"

    print("KERNEL_OK")
</pallas_src>

<mosaic_0001>
module attributes {stable_mosaic.version = 11 : i64} {
  func.func @_table_type_transform_kernel(%arg0: i32, %arg1: memref<24x3xi32, #tpu.memory_space<vmem>>, %arg2: memref<24x128xf32, #tpu.memory_space<vmem>>, %arg3: memref<512x224xbf16, #tpu.memory_space<vmem>>, %arg4: memref<1x224xf32, #tpu.memory_space<vmem>>, %arg5: memref<24x224xf32, #tpu.memory_space<vmem>>) attributes {dimension_semantics = [#tpu.dimension_semantics<parallel>], iteration_bounds = array<i64: 2>, scalar_prefetch = 0 : i64, scratch_operands = 0 : i64, tpu.core_type = #tpu.core_type<tc>, window_params = [{transform_indices = @transform_0, window_bounds = array<i64: 24, 3>}, {transform_indices = @transform_1, window_bounds = array<i64: 24, 128>}, {pipeline_mode = #tpu.pipeline_mode<synchronous>, transform_indices = @transform_2, window_bounds = array<i64: 512, 224>}, {pipeline_mode = #tpu.pipeline_mode<synchronous>, transform_indices = @transform_3, window_bounds = array<i64: 1, 224>}, {transform_indices = @transform_4, window_bounds = array<i64: 24, 224>}]} {
    %c0 = arith.constant 0 : index
    %c0_0 = arith.constant 0 : index
    %0 = vector.load %arg1[%c0, %c0_0] : memref<24x3xi32, #tpu.memory_space<vmem>>, vector<24x3xi32>
    %1 = tpu.iota {dimensions = array<i32: 1>} : vector<24x128xi32>
    %2 = vector.extract_strided_slice %0 {offsets = [0, 0], sizes = [24, 1], strides = [1, 1]} : vector<24x3xi32> to vector<24x1xi32>
    %3 = vector.broadcast %2 : vector<24x1xi32> to vector<24x128xi32>
    %4 = arith.cmpi eq, %1, %3 : vector<24x128xi32>
    %5 = arith.extui %4 : vector<24x128xi1> to vector<24x128xi32>
    %6 = arith.sitofp %5 : vector<24x128xi32> to vector<24x128xf32>
    %7 = arith.truncf %6 : vector<24x128xf32> to vector<24x128xbf16>
    %8 = vector.extract_strided_slice %0 {offsets = [0, 1], sizes = [24, 1], strides = [1, 1]} : vector<24x3xi32> to vector<24x1xi32>
    %9 = vector.broadcast %8 : vector<24x1xi32> to vector<24x128xi32>
    %10 = arith.cmpi eq, %1, %9 : vector<24x128xi32>
    %11 = arith.extui %10 : vector<24x128xi1> to vector<24x128xi32>
    %12 = arith.sitofp %11 : vector<24x128xi32> to vector<24x128xf32>
    %13 = arith.truncf %12 : vector<24x128xf32> to vector<24x128xbf16>
    %14 = vector.extract_strided_slice %0 {offsets = [0, 2], sizes = [24, 1], strides = [1, 1]} : vector<24x3xi32> to vector<24x1xi32>
    %15 = vector.broadcast %14 : vector<24x1xi32> to vector<24x128xi32>
    %16 = arith.cmpi eq, %1, %15 : vector<24x128xi32>
    %17 = arith.extui %16 : vector<24x128xi1> to vector<24x128xi32>
    %18 = arith.sitofp %17 : vector<24x128xi32> to vector<24x128xf32>
    %19 = arith.truncf %18 : vector<24x128xf32> to vector<24x128xbf16>
    %c0_1 = arith.constant 0 : index
    %c0_2 = arith.constant 0 : index
    %20 = vector.load %arg2[%c0_1, %c0_2] : memref<24x128xf32, #tpu.memory_space<vmem>>, vector<24x128xf32>
    %21 = arith.truncf %20 : vector<24x128xf32> to vector<24x128xbf16>
    %22 = tpu.concatenate %7, %13, %19, %21 in 1 : vector<24x128xbf16>, vector<24x128xbf16>, vector<24x128xbf16>, vector<24x128xbf16> -> vector<24x512xbf16>
    %c0_3 = arith.constant 0 : index
    %c0_4 = arith.constant 0 : index
    %23 = vector.load %arg3[%c0_3, %c0_4] : memref<512x224xbf16, #tpu.memory_space<vmem>>, vector<512x224xbf16>
    %cst = arith.constant dense<0.000000e+00> : vector<24x224xf32>
    %24 = tpu.matmul %22, %23, %cst {dimension_numbers = #tpu.dot_dimension_numbers<[1], [0], [0], [1], [0, 0, 1, 1], [], []>} : vector<24x512xbf16>, vector<512x224xbf16>, vector<24x224xf32> -> vector<24x224xf32>
    %c0_5 = arith.constant 0 : index
    %c0_6 = arith.constant 0 : index
    %25 = vector.load %arg4[%c0_5, %c0_6] : memref<1x224xf32, #tpu.memory_space<vmem>>, vector<1x224xf32>
    %26 = vector.broadcast %25 : vector<1x224xf32> to vector<24x224xf32>
    %27 = arith.addf %24, %26 : vector<24x224xf32>
    %c0_7 = arith.constant 0 : index
    %c0_8 = arith.constant 0 : index
    %28 = vector.load %arg5[%c0_7, %c0_8] : memref<24x224xf32, #tpu.memory_space<vmem>>, vector<24x224xf32>
    tpu.vector_store %arg5[%c0_7, %c0_8], %27 {strides = array<i32>} : memref<24x224xf32, #tpu.memory_space<vmem>>, vector<24x224xf32>,
    return
  }
  func.func @transform_0(%arg0: i32) -> (i32, i32) {
    %c0_i32 = arith.constant 0 : i32
    %c0_i32_0 = arith.constant 0 : i32
    return %arg0, %c0_i32 : i32, i32
  }
  func.func @transform_1(%arg0: i32) -> (i32, i32) {
    %c0_i32 = arith.constant 0 : i32
    %c0_i32_0 = arith.constant 0 : i32
    return %arg0, %c0_i32 : i32, i32
  }
  func.func @transform_2(%arg0: i32) -> (i32, i32) {
    %c0_i32 = arith.constant 0 : i32
    %c0_i32_0 = arith.constant 0 : i32
    %c0_i32_1 = arith.constant 0 : i32
    return %c0_i32, %c0_i32_0 : i32, i32
  }
  func.func @transform_3(%arg0: i32) -> (i32, i32) {
    %c0_i32 = arith.constant 0 : i32
    %c0_i32_0 = arith.constant 0 : i32
    %c0_i32_1 = arith.constant 0 : i32
    return %c0_i32, %c0_i32_0 : i32, i32
  }
  func.func @transform_4(%arg0: i32) -> (i32, i32) {
    %c0_i32 = arith.constant 0 : i32
    %c0_i32_0 = arith.constant 0 : i32
    return %arg0, %c0_i32 : i32, i32
  }
}

</mosaic_0001>

<llo_original>
// kernel: tpu_custom_call.1
$region0: #{tpu_custom_call.1}
  #allocation0 [shape = 'u32[]', space=smem, size = 0x4, offset = 0x4, fixed_abs, tag = 'smem constant byte address 0x4 - core index']
  #allocation1 [shape = 'u32[144,128]{1,0:T(1,128)}', space=vmem, size = 0x12000, scoped, tag = 'internal scratch']
  %s0 = inlined_call_operand.vmem [shape: s32[48,3], index: 0, kind: input, shape index: {}]
  %s1 = inlined_call_operand.vmem [shape: f32[48,128], index: 1, kind: input, shape index: {}]
  %s2 = inlined_call_operand.vmem [shape: bf16[512,224], index: 2, kind: input, shape index: {}]
  %s3 = inlined_call_operand.vmem [shape: f32[1,224], index: 3, kind: input, shape index: {}]
  %s4 = inlined_call_operand.hbm [shape: f32[48,224], index: 4, kind: output, shape index: {}]
  %s5 = sld [smem:[#allocation0]]
  $region49: #{tpu_custom_call.1} parent=0
    _
  %s7 = ssub.s32 1, %s5
  %s8 = scalar_select 0, %s7, %s5
  $region1: #{tpu_custom_call.1} parent=0
    #allocation2 [shape = 'u8[49152]{0}', space=vmem, size = 0xc000, scoped, tag = 'output window, operand 0']
    #allocation3 [shape = 's32[2]{0}', space=sflag, size = 0x8, scoped, tag = 'scoped memory for tpu_custom_call.1']
    %9 = vsyncpa [#allocation3], 0
    %s10 = scalar_lea.sflag [#allocation3], 1
    %11 = vsyncpa %s10, 0
    loop: start=0, step=1, limit=4
    $region2: #{tpu_custom_call.1} parent=1 // loop_pre_header
      _
    $region3: #{tpu_custom_call.1} parent=1 // loop_header
      %s13 = sphi 0, %s17
      %p14 = scmp.ge.s32.totalorder %s13, 4
      %s23 = sphi 0, %s25
      %s26 = sphi 0, %s23
      %s27 = sphi 0, %s26
      %s43 = sphi 0, %s27
      %s49 = sphi 0, %s51
      %s52 = sphi 0, %s49
      %s53 = sphi 0, %s52
      %s69 = sphi 0, %s53
      %s73 = sphi 0, %s73
      %s75 = sphi 0, %s73
      %s76 = sphi 0, %s75
      %s90 = sphi 0, %s76
      %s94 = sphi 0, %s94
      %s96 = sphi 0, %s94
      %s97 = sphi 0, %s96
      %s111 = sphi 0, %s97
      %s117 = sphi 0, %s119
      %s120 = sphi 0, %s117
      %s121 = sphi 0, %s120
      %s137 = sphi 0, %s121
    $region4: #{tpu_custom_call.1} parent=1 // loop_header_branch
      %16 = sbr.rel (%p14) target = $region8
    $region5: #{tpu_custom_call.1} parent=1 // loop_body
      %s18 = ssub.s32 %s13, 1
      %s19 = ssub.s32 %s13, 2
      %s20 = sadd.s32 %s13, 1
      %s21 = ssub.s32 %s13, %s20
      %p22 = scmp.eq.s32.totalorder %s21, 0
      %s24 = sadd.s32 %s23, 1
      %s25 = scalar_select %p22, %s23, %s24
      %p28 = pneg %p22
      %p29 = scmp.eq.s32.totalorder %s13, 1
      %p30 = por %p28, %p29
      %p31 = scmp.ne.s32.totalorder %s23, %s26
      %p32 = scmp.eq.s32.totalorder %s13, 0
      %p33 = por %p31, %p32
      %p34 = scmp.ne.s32.totalorder %s23, %s26
      %p35 = scmp.eq.s32.totalorder %s18, 1
      %p36 = por %p34, %p35
      %p37 = scmp.ne.s32.totalorder %s26, %s27
      %p38 = scmp.eq.s32.totalorder %s18, 0
      %p39 = por %p37, %p38
      %p40 = scmp.ne.s32.totalorder %s26, %s27
      %p41 = scmp.eq.s32.totalorder %s19, 1
      %p42 = por %p40, %p41
      %p44 = scmp.ne.s32.totalorder %s27, %s43
      %p45 = scmp.eq.s32.totalorder %s19, 0
      %p46 = por %p44, %p45
      %s47 = ssub.s32 %s13, %s20
      %p48 = scmp.eq.s32.totalorder %s47, 0
      %s50 = sadd.s32 %s49, 1
      %s51 = scalar_select %p48, %s49, %s50
      %p54 = pneg %p48
      %p55 = scmp.eq.s32.totalorder %s13, 1
      %p56 = por %p54, %p55
      %p57 = scmp.ne.s32.totalorder %s49, %s52
      %p58 = scmp.eq.s32.totalorder %s13, 0
      %p59 = por %p57, %p58
      %p60 = scmp.ne.s32.totalorder %s49, %s52
      %p61 = scmp.eq.s32.totalorder %s18, 1
      %p62 = por %p60, %p61
      %p63 = scmp.ne.s32.totalorder %s52, %s53
      %p64 = scmp.eq.s32.totalorder %s18, 0
      %p65 = por %p63, %p64
      %p66 = scmp.ne.s32.totalorder %s52, %s53
      %p67 = scmp.eq.s32.totalorder %s19, 1
      %p68 = por %p66, %p67
      %p70 = scmp.ne.s32.totalorder %s53, %s69
      %p71 = scmp.eq.s32.totalorder %s19, 0
      %p72 = por %p70, %p71
      %s74 = sadd.s32 %s73, 1
      %p77 = scmp.eq.s32.totalorder %s13, 1
      %p78 = scmp.ne.s32.totalorder %s73, %s75
      %p79 = scmp.eq.s32.totalorder %s13, 0
      %p80 = por %p78, %p79
      %p81 = scmp.ne.s32.totalorder %s73, %s75
      %p82 = scmp.eq.s32.totalorder %s18, 1
      %p83 = por %p81, %p82
      %p84 = scmp.ne.s32.totalorder %s75, %s76
      %p85 = scmp.eq.s32.totalorder %s18, 0
      %p86 = por %p84, %p85
      %p87 = scmp.ne.s32.totalorder %s75, %s76
      %p88 = scmp.eq.s32.totalorder %s19, 1
      %p89 = por %p87, %p88
      %p91 = scmp.ne.s32.totalorder %s76, %s90
      %p92 = scmp.eq.s32.totalorder %s19, 0
      %p93 = por %p91, %p92
      %s95 = sadd.s32 %s94, 1
      %p98 = scmp.eq.s32.totalorder %s13, 1
      %p99 = scmp.ne.s32.totalorder %s94, %s96
      %p100 = scmp.eq.s32.totalorder %s13, 0
      %p101 = por %p99, %p100
      %p102 = scmp.ne.s32.totalorder %s94, %s96
      %p103 = scmp.eq.s32.totalorder %s18, 1
      %p104 = por %p102, %p103
      %p105 = scmp.ne.s32.totalorder %s96, %s97
      %p106 = scmp.eq.s32.totalorder %s18, 0
      %p107 = por %p105, %p106
      %p108 = scmp.ne.s32.totalorder %s96, %s97
      %p109 = scmp.eq.s32.totalorder %s19, 1
      %p110 = por %p108, %p109
      %p112 = scmp.ne.s32.totalorder %s97, %s111
      %p113 = scmp.eq.s32.totalorder %s19, 0
      %p114 = por %p112, %p113
      %s115 = ssub.s32 %s13, %s20
      %p116 = scmp.eq.s32.totalorder %s115, 0
      %s118 = sadd.s32 %s117, 1
      %s119 = scalar_select %p116, %s117, %s118
      %p122 = pneg %p116
      %p123 = scmp.eq.s32.totalorder %s13, 1
      %p124 = por %p122, %p123
      %p125 = scmp.ne.s32.totalorder %s117, %s120
      %p126 = scmp.eq.s32.totalorder %s13, 0
      %p127 = por %p125, %p126
      %p128 = scmp.ne.s32.totalorder %s117, %s120
      %p129 = scmp.eq.s32.totalorder %s18, 1
      %p130 = por %p128, %p129
      %p131 = scmp.ne.s32.totalorder %s120, %s121
      %p132 = scmp.eq.s32.totalorder %s18, 0
      %p133 = por %p131, %p132
      %p134 = scmp.ne.s32.totalorder %s120, %s121
      %p135 = scmp.eq.s32.totalorder %s19, 1
      %p136 = por %p134, %p135
      %p138 = scmp.ne.s32.totalorder %s121, %s137
      %p139 = scmp.eq.s32.totalorder %s19, 0
      %p140 = por %p138, %p139
      %p141 = scmp.le.s32.totalorder 1, %s13
      %p142 = scmp.lt.s32.totalorder %s13, 3
      %p143 = pnand %p141, %p142
      %p144 = pneg %p143
      // Predicated region
      $region9: #{tpu_custom_call.1} parent=5 // pred_check
        _
      $region10: #{tpu_custom_call.1} parent=5 // pred_check_branch
        %146 = sbr.rel (%p143) target = $region12
      $region11: #{tpu_custom_call.1} parent=5 // pred_region
        %s147 = ssub.s32 %s13, 1
        // Predicated region
        $region13: #{tpu_custom_call.1} parent=11 // pred_check
          %p148 = pneg %p86
        $region14: #{tpu_custom_call.1} parent=11 // pred_check_branch
          %150 = sbr.rel (%p148) target = $region16
        $region15: #{tpu_custom_call.1} parent=11 // pred_region
          _
        $region16: #{tpu_custom_call.1} parent=11 // pred_fallthru
          _
        // Predicated region
        $region17: #{tpu_custom_call.1} parent=11 // pred_check
          %p151 = pneg %p107
        $region18: #{tpu_custom_call.1} parent=11 // pred_check_branch
          %153 = sbr.rel (%p151) target = $region20
        $region19: #{tpu_custom_call.1} parent=11 // pred_region
          _
        $region20: #{tpu_custom_call.1} parent=11 // pred_fallthru
          _
      $region12: #{tpu_custom_call.1} parent=5 // pred_fallthru
        _
      %p154 = scmp.lt.s32.totalorder %s13, 2
      // Predicated region
      $region21: #{tpu_custom_call.1} parent=5 // pred_check
        %p155 = pneg %p154
      $region22: #{tpu_custom_call.1} parent=5 // pred_check_branch
        %157 = sbr.rel (%p155) target = $region24
      $region23: #{tpu_custom_call.1} parent=5 // pred_region
        // Predicated region
        $region25: #{tpu_custom_call.1} parent=23 // pred_check
          %p158 = pneg %p33
        $region26: #{tpu_custom_call.1} parent=23 // pred_check_branch
          %160 = sbr.rel (%p158) target = $region28
        $region27: #{tpu_custom_call.1} parent=23 // pred_region
          %s161 = smul.u32 3, %s13
          %p162 = scmp.lt.s32.totalorder %s161, 5
          %s163 = scalar_select %p162, %s161, 5
          %s164 = smul.addr %s163, 8
          %s165 = scalar_lea.vmem %s0, %s164
          %s166 = smul.u32 3, %s13
        $region28: #{tpu_custom_call.1} parent=23 // pred_fallthru
          _
        // Predicated region
        $region29: #{tpu_custom_call.1} parent=23 // pred_check
          %p167 = pneg %p59
        $region30: #{tpu_custom_call.1} parent=23 // pred_check_branch
          %169 = sbr.rel (%p167) target = $region32
        $region31: #{tpu_custom_call.1} parent=23 // pred_region
          %s170 = smul.u32 3, %s13
          %p171 = scmp.lt.s32.totalorder %s170, 5
          %s172 = scalar_select %p171, %s170, 5
          %s173 = smul.addr %s172, 8
          %s174 = scalar_lea.vmem %s1, %s173
          %s175 = smul.u32 3, %s13
        $region32: #{tpu_custom_call.1} parent=23 // pred_fallthru
          _
      $region24: #{tpu_custom_call.1} parent=5 // pred_fallthru
        _
      %p176 = scmp.le.s32.totalorder 1, %s13
      %p177 = scmp.lt.s32.totalorder %s13, 3
      %p178 = pnand %p176, %p177
      %p179 = pneg %p178
      // Predicated region
      $region33: #{tpu_custom_call.1} parent=5 // pred_check
        _
      $region34: #{tpu_custom_call.1} parent=5 // pred_check_branch
        %181 = sbr.rel (%p178) target = $region36
      $region35: #{tpu_custom_call.1} parent=5 // pred_region
        %s182 = ssub.s32 %s13, 1
        %s183 = smul.u32 3, %s18
        %p184 = scmp.lt.s32.totalorder %s183, 5
        %s185 = scalar_select %p184, %s183, 5
        %s186 = smul.addr %s185, 8
        %s187 = scalar_lea.vmem %s0, %s186
        %p188 = pneg %p39
        %p189 = pneg %p36
        %s190 = smul.u32 3, %s18
        %p191 = scmp.lt.s32.totalorder %s190, 5
        %s192 = scalar_select %p191, %s190, 5
        %s193 = smul.addr %s192, 8
        %s194 = scalar_lea.vmem %s1, %s193
        %p195 = pneg %p65
        %p196 = pneg %p62
        %p197 = pneg %p86
        %p198 = pneg %p83
        %p199 = pneg %p107
        %p200 = pneg %p104
        %p201 = pneg %p133
        %p202 = pneg %p130
        %s203 = sand.u32 %s120, 1
        %s204 = scalar_lea.sflag [#allocation3], %s203
        %s205 = sand.u32 %s120, 1
        %s206 = smul.addr %s205, 48
        %s207 = scalar_lea.vmem [#allocation2], %s206
        %s208 = smul.u32 3, %s18
        %p209 = scmp.lt.s32.totalorder %s208, 5
        %s210 = scalar_select %p209, %s208, 5
        %s211 = smul.addr %s210, 8
        %s212 = scalar_lea.vmem %s0, %s211
        %s213 = smul.u32 3, %s18
        %s214 = smul.u32 3, %s18
        %p215 = scmp.lt.s32.totalorder %s214, 5
        %s216 = scalar_select %p215, %s214, 5
        %s217 = smul.addr %s216, 8
        %s218 = scalar_lea.vmem %s1, %s217
        %s219 = smul.u32 3, %s18
        %s220 = smul.u32 3, %s18
        %v221 = vld [vmem:[%s212] sm:$0xff]
        %v222 = vld [vmem:[%s212 + $0x8] sm:$0xff]
        %v223 = vld [vmem:[%s212 + $0x10] sm:$0xff]
        %v224 = vlaneseq
        %v225 = vand.u32 %v224, 127
        %226 = vset.pattern.permute.xlu0 0
        %227 = vperm.xlu0 %226, %v221
        %v228 = vpop.permute.xlu0 %227
        %229 = vset.pattern.permute.xlu0 0
        %230 = vperm.xlu0 %229, %v222
        %v231 = vpop.permute.xlu0 %230
        %232 = vset.pattern.permute.xlu0 0
        %233 = vperm.xlu0 %232, %v223
        %v234 = vpop.permute.xlu0 %233
        %vm235 = vcmp.eq.s32.totalorder %v225, %v228
        %vm236 = vcmp.eq.s32.totalorder %v225, %v231
        %vm237 = vcmp.eq.s32.totalorder %v225, %v234
        %v238 = vsel %vm235, 1, 0
        %v239 = vsel %vm236, 1, 0
        %v240 = vsel %vm237, 1, 0
        %v241 = vcvt.s32.f32 %v238
        %v242 = vcvt.s32.f32 %v239
        %v243 = vcvt.s32.f32 %v240
        %v244 = vpack.c.bf16 %v242, %v241
        %v245 = vpack.c.bf16 %v243, %v243
        %246 = vset.pattern.permute.xlu0 1
        %247 = vperm.xlu0 %246, %v221
        %v248 = vpop.permute.xlu0 %247
        %249 = vset.pattern.permute.xlu0 1
        %250 = vperm.xlu0 %249, %v222
        %v251 = vpop.permute.xlu0 %250
        %252 = vset.pattern.permute.xlu0 1
        %253 = vperm.xlu0 %252, %v223
        %v254 = vpop.permute.xlu0 %253
        %vm255 = vcmp.eq.s32.totalorder %v225, %v248
        %vm256 = vcmp.eq.s32.totalorder %v225, %v251
        %vm257 = vcmp.eq.s32.totalorder %v225, %v254
        %v258 = vsel %vm255, 1, 0
        %v259 = vsel %vm256, 1, 0
        %v260 = vsel %vm257, 1, 0
        %v261 = vcvt.s32.f32 %v258
        %v262 = vcvt.s32.f32 %v259
        %v263 = vcvt.s32.f32 %v260
        %v264 = vpack.c.bf16 %v262, %v261
        %v265 = vpack.c.bf16 %v263, %v263
        %266 = vset.pattern.permute.xlu0 2
        %267 = vperm.xlu0 %266, %v221
        %v268 = vpop.permute.xlu0 %267
        %269 = vset.pattern.permute.xlu0 2
        %270 = vperm.xlu0 %269, %v222
        %v271 = vpop.permute.xlu0 %270
        %272 = vset.pattern.permute.xlu0 2
        %273 = vperm.xlu0 %272, %v223
        %v274 = vpop.permute.xlu0 %273
        %vm275 = vcmp.eq.s32.totalorder %v225, %v268
        %vm276 = vcmp.eq.s32.totalorder %v225, %v271
        %vm277 = vcmp.eq.s32.totalorder %v225, %v274
        %v278 = vsel %vm275, 1, 0
        %v279 = vsel %vm276, 1, 0
        %v280 = vsel %vm277, 1, 0
        %v281 = vcvt.s32.f32 %v278
        %v282 = vcvt.s32.f32 %v279
        %v283 = vcvt.s32.f32 %v280
        %v284 = vpack.c.bf16 %v282, %v281
        %v285 = vpack.c.bf16 %v283, %v283
        %v286 = vld [vmem:[%s218] sm:$0xff]
        %v287 = vld [vmem:[%s218 + $0x8] sm:$0xff]
        %v288 = vld [vmem:[%s218 + $0x10] sm:$0xff]
        %v289 = vpack.c.bf16 %v287, %v286
        %v290 = vpack.c.bf16 %v288, %v288
        %v291 = vld [vmem:[%s2] sm:$0xff]
        %v292 = vld [vmem:[%s2 + $0x8] sm:$0xff]
        %v293 = vld [vmem:[%s2 + $0x10] sm:$0xff]
        %v294 = vld [vmem:[%s2 + $0x18] sm:$0xff]
        %v295 = vld [vmem:[%s2 + $0x20] sm:$0xff]
        %v296 = vld [vmem:[%s2 + $0x28] sm:$0xff]
        %v297 = vld [vmem:[%s2 + $0x30] sm:$0xff]
        %v298 = vld [vmem:[%s2 + $0x38] sm:$0xff]
        %v299 = vld [vmem:[%s2 + $0x40] sm:$0xff]
        %v300 = vld [vmem:[%s2 + $0x48] sm:$0xff]
        %v301 = vld [vmem:[%s2 + $0x50] sm:$0xff]
        %v302 = vld [vmem:[%s2 + $0x58] sm:$0xff]
        %v303 = vld [vmem:[%s2 + $0x60] sm:$0xff]
        %v304 = vld [vmem:[%s2 + $0x68] sm:$0xff]
        %v305 = vld [vmem:[%s2 + $0x70] sm:$0xff]
        %v306 = vld [vmem:[%s2 + $0x78] sm:$0xff]
        %v307 = vld [vmem:[%s2 + $0x80] sm:$0xff]
        %v308 = vld [vmem:[%s2 + $0x88] sm:$0xff]
        %v309 = vld [vmem:[%s2 + $0x90] sm:$0xff]
        %v310 = vld [vmem:[%s2 + $0x98] sm:$0xff]
        %v311 = vld [vmem:[%s2 + $0xa0] sm:$0xff]
        %v312 = vld [vmem:[%s2 + $0xa8] sm:$0xff]
        %v313 = vld [vmem:[%s2 + $0xb0] sm:$0xff]
        %v314 = vld [vmem:[%s2 + $0xb8] sm:$0xff]
        %v315 = vld [vmem:[%s2 + $0xc0] sm:$0xff]
        %v316 = vld [vmem:[%s2 + $0xc8] sm:$0xff]
        %v317 = vld [vmem:[%s2 + $0xd0] sm:$0xff]
        %v318 = vld [vmem:[%s2 + $0xd8] sm:$0xff]
        %v319 = vld [vmem:[%s2 + $0xe0] sm:$0xff]
        %v320 = vld [vmem:[%s2 + $0xe8] sm:$0xff]
        %v321 = vld [vmem:[%s2 + $0xf0] sm:$0xff]
        %v322 = vld [vmem:[%s2 + $0xf8] sm:$0xff]
        %v323 = vld [vmem:[%s2 + $0x100] sm:$0xff]
        %v324 = vld [vmem:[%s2 + $0x108] sm:$0xff]
        %v325 = vld [vmem:[%s2 + $0x110] sm:$0xff]
        %v326 = vld [vmem:[%s2 + $0x118] sm:$0xff]
        %v327 = vld [vmem:[%s2 + $0x120] sm:$0xff]
        %v328 = vld [vmem:[%s2 + $0x128] sm:$0xff]
        %v329 = vld [vmem:[%s2 + $0x130] sm:$0xff]
        %v330 = vld [vmem:[%s2 + $0x138] sm:$0xff]
        %v331 = vld [vmem:[%s2 + $0x140] sm:$0xff]
        %v332 = vld [vmem:[%s2 + $0x148] sm:$0xff]
        %v333 = vld [vmem:[%s2 + $0x150] sm:$0xff]
        %v334 = vld [vmem:[%s2 + $0x158] sm:$0xff]
        %v335 = vld [vmem:[%s2 + $0x160] sm:$0xff]
        %v336 = vld [vmem:[%s2 + $0x168] sm:$0xff]
        %v337 = vld [vmem:[%s2 + $0x170] sm:$0xff]
        %v338 = vld [vmem:[%s2 + $0x178] sm:$0xff]
        %v339 = vld [vmem:[%s2 + $0x180] sm:$0xff]
        %v340 = vld [vmem:[%s2 + $0x188] sm:$0xff]
        %v341 = vld [vmem:[%s2 + $0x190] sm:$0xff]
        %v342 = vld [vmem:[%s2 + $0x198] sm:$0xff]
        %v343 = vld [vmem:[%s2 + $0x1a0] sm:$0xff]
        %v344 = vld [vmem:[%s2 + $0x1a8] sm:$0xff]
        %v345 = vld [vmem:[%s2 + $0x1b0] sm:$0xff]
        %v346 = vld [vmem:[%s2 + $0x1b8] sm:$0xff]
        %v347 = vld [vmem:[%s2 + $0x1c0] sm:$0xff]
        %v348 = vld [vmem:[%s2 + $0x1c8] sm:$0xff]
        %v349 = vld [vmem:[%s2 + $0x1d0] sm:$0xff]
        %v350 = vld [vmem:[%s2 + $0x1d8] sm:$0xff]
        %v351 = vld [vmem:[%s2 + $0x1e0] sm:$0xff]
        %v352 = vld [vmem:[%s2 + $0x1e8] sm:$0xff]
        %v353 = vld [vmem:[%s2 + $0x1f0] sm:$0xff]
        %v354 = vld [vmem:[%s2 + $0x1f8] sm:$0xff]
        %v355 = vld [vmem:[%s3] sm:$0x3]
        %v357 = vlaneseq
        %v358 = vshrl.u32 %v357, 7
        %v359 = vsub.s32 0, %v358
        %v360 = vrot.slane %v355, %v359
        %v361 = vlaneseq
        %v362 = vshrl.u32 %v361, 7
        %v363 = vsub.s32 1, %v362
        %v364 = vrot.slane %v355, %v363
        %v431 = vunpack.c.l.b16 %v291
        %v432 = vunpack.c.h.b16 %v291
        %v433 = vunpack.c.l.b16 %v292
        %v434 = vunpack.c.h.b16 %v292
        %v435 = vunpack.c.l.b16 %v293
        %v436 = vunpack.c.h.b16 %v293
        %v437 = vunpack.c.l.b16 %v294
        %v438 = vunpack.c.h.b16 %v294
        %v439 = vunpack.c.l.b16 %v295
        %v440 = vunpack.c.h.b16 %v295
        %v441 = vunpack.c.l.b16 %v296
        %v442 = vunpack.c.h.b16 %v296
        %v443 = vunpack.c.l.b16 %v297
        %v444 = vunpack.c.h.b16 %v297
        %v445 = vunpack.c.l.b16 %v298
        %v446 = vunpack.c.h.b16 %v298
        %v447 = vunpack.c.l.b16 %v299
        %v448 = vunpack.c.h.b16 %v299
        %v449 = vunpack.c.l.b16 %v300
        %v450 = vunpack.c.h.b16 %v300
        %v451 = vunpack.c.l.b16 %v301
        %v452 = vunpack.c.h.b16 %v301
        %v453 = vunpack.c.l.b16 %v302
        %v454 = vunpack.c.h.b16 %v302
        %v455 = vunpack.c.l.b16 %v303
        %v456 = vunpack.c.h.b16 %v303
        %v457 = vunpack.c.l.b16 %v304
        %v458 = vunpack.c.h.b16 %v304
        %v459 = vunpack.c.l.b16 %v305
        %v460 = vunpack.c.h.b16 %v305
        %v461 = vunpack.c.l.b16 %v306
        %v462 = vunpack.c.h.b16 %v306
        %v463 = vunpack.c.l.b16 %v307
        %v464 = vunpack.c.h.b16 %v307
        %v465 = vunpack.c.l.b16 %v308
        %v466 = vunpack.c.h.b16 %v308
        %v467 = vunpack.c.l.b16 %v309
        %v468 = vunpack.c.h.b16 %v309
        %v469 = vunpack.c.l.b16 %v310
        %v470 = vunpack.c.h.b16 %v310
        %v471 = vunpack.c.l.b16 %v311
        %v472 = vunpack.c.h.b16 %v311
        %v473 = vunpack.c.l.b16 %v312
        %v474 = vunpack.c.h.b16 %v312
        %v475 = vunpack.c.l.b16 %v313
        %v476 = vunpack.c.h.b16 %v313
        %v477 = vunpack.c.l.b16 %v314
        %v478 = vunpack.c.h.b16 %v314
        %v479 = vunpack.c.l.b16 %v315
        %v480 = vunpack.c.h.b16 %v315
        %v481 = vunpack.c.l.b16 %v316
        %v482 = vunpack.c.h.b16 %v316
        %v483 = vunpack.c.l.b16 %v317
        %v484 = vunpack.c.h.b16 %v317
        %v485 = vunpack.c.l.b16 %v318
        %v486 = vunpack.c.h.b16 %v318
        %v487 = vunpack.c.l.b16 %v319
        %v488 = vunpack.c.h.b16 %v319
        %v489 = vunpack.c.l.b16 %v320
        %v490 = vunpack.c.h.b16 %v320
        %v491 = vunpack.c.l.b16 %v321
        %v492 = vunpack.c.h.b16 %v321
        %v493 = vunpack.c.l.b16 %v322
        %v494 = vunpack.c.h.b16 %v322
        %v495 = vunpack.c.l.b16 %v323
        %v496 = vunpack.c.h.b16 %v323
        %v497 = vunpack.c.l.b16 %v324
        %v498 = vunpack.c.h.b16 %v324
        %v499 = vunpack.c.l.b16 %v325
        %v500 = vunpack.c.h.b16 %v325
        %v501 = vunpack.c.l.b16 %v326
        %v502 = vunpack.c.h.b16 %v326
        %v503 = vunpack.c.l.b16 %v327
        %v504 = vunpack.c.h.b16 %v327
        %v505 = vunpack.c.l.b16 %v328
        %v506 = vunpack.c.h.b16 %v328
        %v507 = vunpack.c.l.b16 %v329
        %v508 = vunpack.c.h.b16 %v329
        %v509 = vunpack.c.l.b16 %v330
        %v510 = vunpack.c.h.b16 %v330
        %v511 = vunpack.c.l.b16 %v331
        %v512 = vunpack.c.h.b16 %v331
        %v513 = vunpack.c.l.b16 %v332
        %v514 = vunpack.c.h.b16 %v332
        %v515 = vunpack.c.l.b16 %v333
        %v516 = vunpack.c.h.b16 %v333
        %v517 = vunpack.c.l.b16 %v334
        %v518 = vunpack.c.h.b16 %v334
        %v519 = vunpack.c.l.b16 %v335
        %v520 = vunpack.c.h.b16 %v335
        %v521 = vunpack.c.l.b16 %v336
        %v522 = vunpack.c.h.b16 %v336
        %v523 = vunpack.c.l.b16 %v337
        %v524 = vunpack.c.h.b16 %v337
        %v525 = vunpack.c.l.b16 %v338
        %v526 = vunpack.c.h.b16 %v338
        %v527 = vunpack.c.l.b16 %v339
        %v528 = vunpack.c.h.b16 %v339
        %v529 = vunpack.c.l.b16 %v340
        %v530 = vunpack.c.h.b16 %v340
        %v531 = vunpack.c.l.b16 %v341
        %v532 = vunpack.c.h.b16 %v341
        %v533 = vunpack.c.l.b16 %v342
        %v534 = vunpack.c.h.b16 %v342
        %v535 = vunpack.c.l.b16 %v343
        %v536 = vunpack.c.h.b16 %v343
        %v537 = vunpack.c.l.b16 %v344
        %v538 = vunpack.c.h.b16 %v344
        %v539 = vunpack.c.l.b16 %v345
        %v540 = vunpack.c.h.b16 %v345
        %v541 = vunpack.c.l.b16 %v346
        %v542 = vunpack.c.h.b16 %v346
        %v543 = vunpack.c.l.b16 %v347
        %v544 = vunpack.c.h.b16 %v347
        %v545 = vunpack.c.l.b16 %v348
        %v546 = vunpack.c.h.b16 %v348
        %v547 = vunpack.c.l.b16 %v349
        %v548 = vunpack.c.h.b16 %v349
        %v549 = vunpack.c.l.b16 %v350
        %v550 = vunpack.c.h.b16 %v350
        %v551 = vunpack.c.l.b16 %v351
        %v552 = vunpack.c.h.b16 %v351
        %v553 = vunpack.c.l.b16 %v352
        %v554 = vunpack.c.h.b16 %v352
        %v555 = vunpack.c.l.b16 %v353
        %v556 = vunpack.c.h.b16 %v353
        %v557 = vunpack.c.l.b16 %v354
        %v558 = vunpack.c.h.b16 %v354
        %v559 = vpack.c.b16 %v433, %v431
        %v560 = vpack.c.b16 %v434, %v432
        %v561 = vpack.c.b16 %v437, %v435
        %v562 = vpack.c.b16 %v438, %v436
        %v563 = vpack.c.b16 %v441, %v439
        %v564 = vpack.c.b16 %v442, %v440
        %v565 = vpack.c.b16 %v445, %v443
        %v566 = vpack.c.b16 %v446, %v444
        %v567 = vpack.c.b16 %v449, %v447
        %v568 = vpack.c.b16 %v450, %v448
        %v569 = vpack.c.b16 %v453, %v451
        %v570 = vpack.c.b16 %v454, %v452
        %v571 = vpack.c.b16 %v457, %v455
        %v572 = vpack.c.b16 %v458, %v456
        %v573 = vpack.c.b16 %v461, %v459
        %v574 = vpack.c.b16 %v462, %v460
        %v575 = vpack.c.b16 %v465, %v463
        %v576 = vpack.c.b16 %v466, %v464
        %v577 = vpack.c.b16 %v469, %v467
        %v578 = vpack.c.b16 %v470, %v468
        %v579 = vpack.c.b16 %v473, %v471
        %v580 = vpack.c.b16 %v474, %v472
        %v581 = vpack.c.b16 %v477, %v475
        %v582 = vpack.c.b16 %v478, %v476
        %v583 = vpack.c.b16 %v481, %v479
        %v584 = vpack.c.b16 %v482, %v480
        %v585 = vpack.c.b16 %v485, %v483
        %v586 = vpack.c.b16 %v486, %v484
        %v587 = vpack.c.b16 %v489, %v487
        %v588 = vpack.c.b16 %v490, %v488
        %v589 = vpack.c.b16 %v493, %v491
        %v590 = vpack.c.b16 %v494, %v492
        %v591 = vpack.c.b16 %v497, %v495
        %v592 = vpack.c.b16 %v498, %v496
        %v593 = vpack.c.b16 %v501, %v499
        %v594 = vpack.c.b16 %v502, %v500
        %v595 = vpack.c.b16 %v505, %v503
        %v596 = vpack.c.b16 %v506, %v504
        %v597 = vpack.c.b16 %v509, %v507
        %v598 = vpack.c.b16 %v510, %v508
        %v599 = vpack.c.b16 %v513, %v511
        %v600 = vpack.c.b16 %v514, %v512
        %v601 = vpack.c.b16 %v517, %v515
        %v602 = vpack.c.b16 %v518, %v516
        %v603 = vpack.c.b16 %v521, %v519
        %v604 = vpack.c.b16 %v522, %v520
        %v605 = vpack.c.b16 %v525, %v523
        %v606 = vpack.c.b16 %v526, %v524
        %v607 = vpack.c.b16 %v529, %v527
        %v608 = vpack.c.b16 %v530, %v528
        %v609 = vpack.c.b16 %v533, %v531
        %v610 = vpack.c.b16 %v534, %v532
        %v611 = vpack.c.b16 %v537, %v535
        %v612 = vpack.c.b16 %v538, %v536
        %v613 = vpack.c.b16 %v541, %v539
        %v614 = vpack.c.b16 %v542, %v540
        %v615 = vpack.c.b16 %v545, %v543
        %v616 = vpack.c.b16 %v546, %v544
        %v617 = vpack.c.b16 %v549, %v547
        %v618 = vpack.c.b16 %v550, %v548
        %v619 = vpack.c.b16 %v553, %v551
        %v620 = vpack.c.b16 %v554, %v552
        %v621 = vpack.c.b16 %v557, %v555
        %v622 = vpack.c.b16 %v558, %v556
        %687 = vmatprep.subr.bf16.mxu0 %v560
        %688 = vmatpush1.bf16.msra.mxu0 %v559
        %689 = vmatprep.subr.bf16.mxu0 %v562
        %690 = vmatpush1.bf16.msra.mxu0 %v561
        %691 = vmatprep.subr.bf16.mxu0 %v564
        %692 = vmatpush1.bf16.msra.mxu0 %v563
        %693 = vmatprep.subr.bf16.mxu0 %v566
        %694 = vmatpush1.bf16.msra.mxu0 %v565
        %695 = vmatprep.subr.bf16.mxu0 %v568
        %696 = vmatpush1.bf16.msra.mxu0 %v567
        %697 = vmatprep.subr.bf16.mxu0 %v570
        %698 = vmatpush1.bf16.msra.mxu0 %v569
        %699 = vmatprep.subr.bf16.mxu0 %v572
        %700 = vmatpush1.bf16.msra.mxu0 %v571
        %701 = vmatprep.subr.bf16.mxu0 %v574
        %702 = vmatpush1.bf16.msra.mxu0 %v573
        %703 = vmatprep.subr.bf16.mxu0 %v576
        %704 = vmatpush1.bf16.msra.mxu0 %v575
        %705 = vmatprep.subr.bf16.mxu0 %v578
        %706 = vmatpush1.bf16.msra.mxu0 %v577
        %707 = vmatprep.subr.bf16.mxu0 %v580
        %708 = vmatpush1.bf16.msra.mxu0 %v579
        %709 = vmatprep.subr.bf16.mxu0 %v582
        %710 = vmatpush1.bf16.msra.mxu0 %v581
        %711 = vmatprep.subr.bf16.mxu0 %v584
        %712 = vmatpush1.bf16.msra.mxu0 %v583
        %713 = vmatprep.subr.bf16.mxu0 %v586
        %714 = vmatpush1.bf16.msra.mxu0 %v585
        %715 = vmatprep.subr.bf16.mxu0 %v588
        %716 = vmatpush1.bf16.msra.mxu0 %v587
        %717 = vmatprep.subr.bf16.mxu0 %v590
        %718 = vmatpush1.bf16.msra.mxu0 %v589
        %719 = vmatprep.mubr.bf16.mxu0 %v264
        %720 = vmatmul.mubr.bf16.gmra.mrb[0].mxu0 %v244
        %v721 = vpop.f32.mrb[0].mxu0
        %v722 = vadd.f32 %v360, %v721
        %v723 = vpop.f32.mrb[0].mxu0
        %v724 = vadd.f32 %v364, %v723
        %v725 = vpop.f32.mrb[0].mxu0
        %v726 = vadd.f32 %v360, %v725
        %v727 = vpop.f32.mrb[0].mxu0
        %v728 = vadd.f32 %v364, %v727
        %729 = vmatprep.mubr.bf16.mxu0 %v265
        %730 = vmatmul.mubr.bf16.gmra.mrb[0].mxu0 %v245
        %v731 = vpop.f32.mrb[0].mxu0
        %v732 = vadd.f32 %v360, %v731
        %v733 = vpop.f32.mrb[0].mxu0
        %v734 = vadd.f32 %v364, %v733
        %v735 = vpop.f32.mrb[0].mxu0
        %v736 = vpop.f32.mrb[0].mxu0
        %737 = vdwg.mxu0
        %738 = vmatprep.subr.bf16.mxu0 %v592
        %739 = vmatpush1.bf16.msra.mxu0 %v591
        %740 = vmatprep.subr.bf16.mxu0 %v594
        %741 = vmatpush1.bf16.msra.mxu0 %v593
        %742 = vmatprep.subr.bf16.mxu0 %v596
        %743 = vmatpush1.bf16.msra.mxu0 %v595
        %744 = vmatprep.subr.bf16.mxu0 %v598
        %745 = vmatpush1.bf16.msra.mxu0 %v597
        %746 = vmatprep.subr.bf16.mxu0 %v600
        %747 = vmatpush1.bf16.msra.mxu0 %v599
        %748 = vmatprep.subr.bf16.mxu0 %v602
        %749 = vmatpush1.bf16.msra.mxu0 %v601
        %750 = vmatprep.subr.bf16.mxu0 %v604
        %751 = vmatpush1.bf16.msra.mxu0 %v603
        %752 = vmatprep.subr.bf16.mxu0 %v606
        %753 = vmatpush1.bf16.msra.mxu0 %v605
        %754 = vmatprep.subr.bf16.mxu0 %v608
        %755 = vmatpush1.bf16.msra.mxu0 %v607
        %756 = vmatprep.subr.bf16.mxu0 %v610
        %757 = vmatpush1.bf16.msra.mxu0 %v609
        %758 = vmatprep.subr.bf16.mxu0 %v612
        %759 = vmatpush1.bf16.msra.mxu0 %v611
        %760 = vmatprep.subr.bf16.mxu0 %v614
        %761 = vmatpush1.bf16.msra.mxu0 %v613
        %762 = vmatprep.subr.bf16.mxu0 %v616
        %763 = vmatpush1.bf16.msra.mxu0 %v615
        %764 = vmatprep.subr.bf16.mxu0 %v618
        %765 = vmatpush1.bf16.msra.mxu0 %v617
        %766 = vmatprep.subr.bf16.mxu0 %v620
        %767 = vmatpush1.bf16.msra.mxu0 %v619
        %768 = vmatprep.subr.bf16.mxu0 %v622
        %769 = vmatpush1.bf16.msra.mxu0 %v621
        %770 = vmatprep.mubr.bf16.mxu0 %v289
        %771 = vmatmul.mubr.bf16.gmra.mrb[0].mxu0 %v284
        %v772 = vpop.f32.mrb[0].mxu0
        %v773 = vadd.f32 %v722, %v772
        %v774 = vpop.f32.mrb[0].mxu0
        %v775 = vadd.f32 %v724, %v774
        %v776 = vpop.f32.mrb[0].mxu0
        %v777 = vadd.f32 %v726, %v776
        %v778 = vpop.f32.mrb[0].mxu0
        %v779 = vadd.f32 %v728, %v778
        %780 = vmatprep.mubr.bf16.mxu0 %v290
        %781 = vmatmul.mubr.bf16.gmra.mrb[0].mxu0 %v285
        %v782 = vpop.f32.mrb[0].mxu0
        %v783 = vadd.f32 %v732, %v782
        %v784 = vpop.f32.mrb[0].mxu0
        %v785 = vadd.f32 %v734, %v784
        %v786 = vpop.f32.mrb[0].mxu0
        %v787 = vpop.f32.mrb[0].mxu0
        %788 = vdwg.mxu0
        %789 = vst [vmem:[%s207] sm:$0xff] %v773
        %vm790 = vcmask 785408
        %791 = vst.msk [vmem:[%s207 + $0x8] sm:$0xff] %vm790, %v775
        %792 = vst [vmem:[%s207 + $0x10] sm:$0xff] %v777
        %793 = vst.msk [vmem:[%s207 + $0x18] sm:$0xff] %vm790, %v779
        %794 = vst [vmem:[%s207 + $0x20] sm:$0xff] %v783
        %795 = vst.msk [vmem:[%s207 + $0x28] sm:$0xff] %vm790, %v785
        %s796 = sand.u32 %s120, 1
        %s797 = scalar_lea.sflag [#allocation3], %s796
        %s798 = sand.u32 %s120, 1
        %s799 = smul.addr %s798, 48
        %s800 = scalar_lea.vmem [#allocation2], %s799
        // Predicated region
        $region37: #{tpu_custom_call.1} parent=35 // pred_check
          %p801 = pneg %p130
        $region38: #{tpu_custom_call.1} parent=35 // pred_check_branch
          %803 = sbr.rel (%p801) target = $region40
        $region39: #{tpu_custom_call.1} parent=35 // pred_region
          %s804 = smul.u32 3, %s18
          %s806 = ssub.s32 768, 768
          %807 = vsyncadd %s797, %s806
          %s808 = smul.addr %s804, 2
          %s809 = smul.addr %s808, 128
          %s810 = scalar_lea.hbm %s4, %s809
          %s811 = sshll.u32 %s800, 4
          %s812 = int_to_ptr.vmem [resolvable:$true] %s811
          %817 = dma.vmem_to_hbm [thread:$0]  %s812, 768, %s810, %s797, 256, 256, 16
        $region40: #{tpu_custom_call.1} parent=35 // pred_fallthru
          _
      $region36: #{tpu_custom_call.1} parent=5 // pred_fallthru
        _
      %p818 = scmp.le.s32.totalorder 2, %s13
      // Predicated region
      $region41: #{tpu_custom_call.1} parent=5 // pred_check
        %p819 = pneg %p818
      $region42: #{tpu_custom_call.1} parent=5 // pred_check_branch
        %821 = sbr.rel (%p819) target = $region44
      $region43: #{tpu_custom_call.1} parent=5 // pred_region
        %s822 = ssub.s32 %s13, 2
        // Predicated region
        $region45: #{tpu_custom_call.1} parent=43 // pred_check
          %p823 = pneg %p136
        $region46: #{tpu_custom_call.1} parent=43 // pred_check_branch
          %825 = sbr.rel (%p823) target = $region48
        $region47: #{tpu_custom_call.1} parent=43 // pred_region
          %s826 = sand.u32 %s121, 1
          %s827 = scalar_lea.sflag [#allocation3], %s826
          %s828 = sand.u32 %s121, 1
          %s829 = smul.addr %s828, 48
          %s830 = scalar_lea.vmem [#allocation2], %s829
          %831 = dma.done %s827, 768
        $region48: #{tpu_custom_call.1} parent=43 // pred_fallthru
          _
      $region44: #{tpu_custom_call.1} parent=5 // pred_fallthru
        _
    $region6: #{tpu_custom_call.1} parent=1 // loop_footer
      %s17 = sadd.s32 1, %s13
    $region7: #{tpu_custom_call.1} parent=1 // loop_footer_branch
      %12 = sbr.rel target = $region3
    $region8: #{tpu_custom_call.1} parent=1 // loop_exit
      _
    %832 = vsyncpa [#allocation3], 1
    %s833 = scalar_lea.sflag [#allocation3], 1
    %834 = vsyncpa %s833, 1

</llo_original>
